<compile_context>
chip_gen: v7x
topology: tpu7x:2x2x1
jax: 0.10.0
libtpu: 0.0.40
codegen_flags: <defaults>
</compile_context>

<pallas_src>
import functools

import jax
import jax.numpy as jnp
from jax.experimental import pallas as pl
from jax.experimental.pallas import tpu as pltpu


def _round_up(x: int, m: int) -> int:
    return ((x + m - 1) // m) * m


def choose_row_tile(c_out: int, target_blocks: int = 2) -> int:
    """Row-tile so the C_out grid has `target_blocks` steps (multiple of 8)."""
    return _round_up(-(-c_out // target_blocks), 8)


def prepare_se_conv_params(w1, b1, w2, *, tm):
    """One-time weight preprocessing — do this at weight-load time, NOT per call.

    w1: [C, Cse, 1, 1] conv2d47 weight   b1: [C] conv2d47 bias
    w2: [C, C, 1, 1]   conv2d48 weight (no bias)
    Returns (w1_bf16 [C,Cse], b1_f32 [C], w2_bf16 [C_rows, C]) with C_rows a
    multiple of tm (rows zero-padded; the contraction dim is left at C).
    """
    C, Cse = w1.shape[0], w1.shape[1]
    w1_p = w1.reshape(C, Cse).astype(jnp.bfloat16)
    b1_p = b1.reshape(C).astype(jnp.float32)
    w2_p = w2.reshape(C, C).astype(jnp.bfloat16)
    c_rows = _round_up(C, tm)
    if c_rows != C:
        w2_p = jnp.pad(w2_p, ((0, c_rows - C), (0, 0)))
    return w1_p, b1_p, w2_p


def _se_scale_matmul_kernel(s_ref, x_ref, w2_ref, o_ref):
    """One grid step = one C_out row-tile of the 1x1 conv.

    s_ref : (C, 1)   f32   SE gate per input channel    (resident, fetched once)
    x_ref : (C, HW)  f32   activation, channel-major    (resident, fetched once)
    w2_ref: (tm, C)  bf16  row-block of conv2d48 weight (streamed from HBM)
    o_ref : (tm, HW)       output row-block
    """
    # x149 = sigmoid(x147) * x143: scale in f32, cast to the MXU streaming dtype.
    y = (x_ref[...].astype(jnp.float32) * s_ref[...]).astype(w2_ref.dtype)
    # x150 = conv2d48(x149): full-K contraction on the MXU, f32 accumulation.
    o_ref[...] = jnp.dot(
        w2_ref[...], y, preferred_element_type=jnp.float32
    ).astype(o_ref.dtype)


@functools.partial(jax.jit, static_argnames=("tm",))
def se_conv_forward(x143, x146, w1_p, b1_p, w2_p, *, tm):
    """Equivalent of M.forward(x146, x143) using weights from prepare_se_conv_params."""
    N, C, H, W = x143.shape
    assert N == 1, "module operates on batch size 1"
    Cse = x146.shape[1]
    HW = H * W
    c_rows = w2_p.shape[0]
    assert c_rows % tm == 0 and c_rows >= C, "w2_p must be prepared with the same tm"

    # ---- SE gate (conv2d47 + sigmoid): tiny [C,Cse]@[Cse] matvec, once per call ----
    z = x146.reshape(Cse).astype(w1_p.dtype)
    s = jax.nn.sigmoid(jnp.dot(w1_p, z, preferred_element_type=jnp.float32) + b1_p)

    # No padding of x / s: full-extent trailing block dims (C, HW) are legal block shapes.
    x2 = x143.reshape(C, HW)
    s2 = s.reshape(C, 1)

    grid = (c_rows // tm,)
    out_p = pl.pallas_call(
        _se_scale_matmul_kernel,
        out_shape=jax.ShapeDtypeStruct((c_rows, HW), x143.dtype),
        grid_spec=pltpu.PrefetchScalarGridSpec(
            num_scalar_prefetch=0,
            grid=grid,
            in_specs=[
                # Constant index maps -> fetched into VMEM once, kept resident.
                pl.BlockSpec((C, 1), lambda i: (0, 0)),    # s (SE gate)
                pl.BlockSpec((C, HW), lambda i: (0, 0)),   # X (activation)
                # Only W2 row-blocks stream from HBM (the dominant traffic).
                pl.BlockSpec((tm, C), lambda i: (i, 0)),   # W2 row-block
            ],
            out_specs=pl.BlockSpec((tm, HW), lambda i: (i, 0)),
        ),
        compiler_params=pltpu.CompilerParams(
            dimension_semantics=("parallel",),  # 2 even steps -> v7x megacore split
        ),
    )(s2, x2, w2_p)

    out = out_p[:C] if c_rows != C else out_p
    return out.reshape(N, C, H, W)


def reference_forward(x143, x146, w1, b1, w2):
    """Pure-JAX reference of the PyTorch forward (1x1 convs == channel matmuls)."""
    _, C, H, W = x143.shape
    Cse = x146.shape[1]
    z = x146.reshape(Cse)
    s = jax.nn.sigmoid(w1.reshape(C, Cse) @ z + b1)           # [C]
    y = x143 * s.reshape(1, C, 1, 1)                          # broadcast mul
    return jnp.einsum("oc,nchw->nohw", w2.reshape(C, C), y)   # 1x1 conv, no bias


if __name__ == "__main__":
    # Small shapes with the same structure as the module (original: Cse=348, C=1392,
    # H=W=14).  C=344 with 2 row blocks exercises the output-row padding/slice path
    # (344 -> 352) plus the unpadded K=C and HW=196 full-dim blocks that the
    # production shapes rely on.
    N, Cse, C, H, W = 1, 88, 344, 14, 14

    key = jax.random.PRNGKey(0)
    k1, k2, k3, k4, k5 = jax.random.split(key, 5)

    x143 = jax.random.normal(k1, (N, C, H, W), dtype=jnp.float32)
    x146 = jax.random.normal(k2, (N, Cse, 1, 1), dtype=jnp.float32)

    w1 = jax.random.normal(k3, (C, Cse, 1, 1), dtype=jnp.float32) * (1.0 / Cse**0.5)
    b1 = jax.random.normal(k4, (C,), dtype=jnp.float32) * 0.01
    w2 = jax.random.normal(k5, (C, C, 1, 1), dtype=jnp.float32) * (1.0 / C**0.5)

    # Load-time preprocessing (bf16 cast + row pad) — happens once, outside the forward.
    tm = choose_row_tile(C, target_blocks=2)                     # 176 -> grid of 2
    w1_p, b1_p, w2_p = prepare_se_conv_params(w1, b1, w2, tm=tm)

    out = se_conv_forward(x143, x146, w1_p, b1_p, w2_p, tm=tm)
    out = jax.block_until_ready(out)

    ref = reference_forward(x143, x146, w1, b1, w2)
    assert out.shape == (N, C, H, W)
    assert jnp.allclose(out, ref, atol=2e-2, rtol=2e-2), "mismatch vs reference"

    print("KERNEL_OK")
</pallas_src>

<mosaic_0001>
module attributes {stable_mosaic.version = 11 : i64} {
  func.func @_se_scale_matmul_kernel(%arg0: i32, %arg1: memref<344x1xf32, #tpu.memory_space<vmem>>, %arg2: memref<344x196xf32, #tpu.memory_space<vmem>>, %arg3: memref<176x344xbf16, #tpu.memory_space<vmem>>, %arg4: memref<176x196xf32, #tpu.memory_space<vmem>>) attributes {dimension_semantics = [#tpu.dimension_semantics<parallel>], iteration_bounds = array<i64: 2>, scalar_prefetch = 0 : i64, scratch_operands = 0 : i64, tpu.core_type = #tpu.core_type<tc>, window_params = [{pipeline_mode = #tpu.pipeline_mode<synchronous>, transform_indices = @transform_0, window_bounds = array<i64: 344, 1>}, {pipeline_mode = #tpu.pipeline_mode<synchronous>, transform_indices = @transform_1, window_bounds = array<i64: 344, 196>}, {transform_indices = @transform_2, window_bounds = array<i64: 176, 344>}, {transform_indices = @transform_3, window_bounds = array<i64: 176, 196>}]} {
    %c0 = arith.constant 0 : index
    %c0_0 = arith.constant 0 : index
    %0 = vector.load %arg2[%c0, %c0_0] : memref<344x196xf32, #tpu.memory_space<vmem>>, vector<344x196xf32>
    %c0_1 = arith.constant 0 : index
    %c0_2 = arith.constant 0 : index
    %1 = vector.load %arg1[%c0_1, %c0_2] : memref<344x1xf32, #tpu.memory_space<vmem>>, vector<344x1xf32>
    %2 = vector.broadcast %1 : vector<344x1xf32> to vector<344x196xf32>
    %3 = arith.mulf %0, %2 : vector<344x196xf32>
    %4 = arith.truncf %3 : vector<344x196xf32> to vector<344x196xbf16>
    %c0_3 = arith.constant 0 : index
    %c0_4 = arith.constant 0 : index
    %5 = vector.load %arg3[%c0_3, %c0_4] : memref<176x344xbf16, #tpu.memory_space<vmem>>, vector<176x344xbf16>
    %cst = arith.constant dense<0.000000e+00> : vector<176x196xf32>
    %6 = tpu.matmul %5, %4, %cst {dimension_numbers = #tpu.dot_dimension_numbers<[1], [0], [0], [1], [0, 0, 1, 1], [], []>} : vector<176x344xbf16>, vector<344x196xbf16>, vector<176x196xf32> -> vector<176x196xf32>
    %c0_5 = arith.constant 0 : index
    %c0_6 = arith.constant 0 : index
    %7 = vector.load %arg4[%c0_5, %c0_6] : memref<176x196xf32, #tpu.memory_space<vmem>>, vector<176x196xf32>
    tpu.vector_store %arg4[%c0_5, %c0_6], %6 {strides = array<i32>} : memref<176x196xf32, #tpu.memory_space<vmem>>, vector<176x196xf32>,
    return
  }
  func.func @transform_0(%arg0: i32) -> (i32, i32) {
    %c0_i32 = arith.constant 0 : i32
    %c0_i32_0 = arith.constant 0 : i32
    %c0_i32_1 = arith.constant 0 : i32
    return %c0_i32, %c0_i32_0 : i32, i32
  }
  func.func @transform_1(%arg0: i32) -> (i32, i32) {
    %c0_i32 = arith.constant 0 : i32
    %c0_i32_0 = arith.constant 0 : i32
    %c0_i32_1 = arith.constant 0 : i32
    return %c0_i32, %c0_i32_0 : i32, i32
  }
  func.func @transform_2(%arg0: i32) -> (i32, i32) {
    %c0_i32 = arith.constant 0 : i32
    %c0_i32_0 = arith.constant 0 : i32
    return %arg0, %c0_i32 : i32, i32
  }
  func.func @transform_3(%arg0: i32) -> (i32, i32) {
    %c0_i32 = arith.constant 0 : i32
    %c0_i32_0 = arith.constant 0 : i32
    return %arg0, %c0_i32 : i32, i32
  }
}

</mosaic_0001>

<llo_original>
// kernel: se_conv_forward.1
$region0: #{se_conv_forward.1}
  #allocation0 [shape = 'u32[]', space=smem, size = 0x4, offset = 0x4, fixed_abs, tag = 'smem constant byte address 0x4 - core index']
  #allocation1 [shape = 'u32[144,128]{1,0:T(1,128)}', space=vmem, size = 0x12000, scoped, tag = 'internal scratch']
  %s0 = inlined_call_operand.vmem [shape: f32[344,1], index: 0, kind: input, shape index: {}]
  %s1 = inlined_call_operand.vmem [shape: f32[344,196], index: 1, kind: input, shape index: {}]
  %s2 = inlined_call_operand.vmem [shape: bf16[352,344], index: 2, kind: input, shape index: {}]
  %s3 = inlined_call_operand.vmem [shape: f32[352,196], index: 3, kind: output, shape index: {}]
  %s4 = sld [smem:[#allocation0]]
  $region45: #{se_conv_forward.1} parent=0
    _
  %s6 = ssub.s32 1, %s4
  %s7 = scalar_select 0, %s6, %s4
  loop: start=0, step=1, limit=4
  $region2: #{se_conv_forward.1} parent=0 // loop_pre_header
    _
  $region3: #{se_conv_forward.1} parent=0 // loop_header
    %s9 = sphi 0, %s13
    %p10 = scmp.ge.s32.totalorder %s9, 4
    %s17 = sphi 0, %s17
    %s19 = sphi 0, %s17
    %s20 = sphi 0, %s19
    %s34 = sphi 0, %s20
    %s38 = sphi 0, %s38
    %s40 = sphi 0, %s38
    %s41 = sphi 0, %s40
    %s55 = sphi 0, %s41
    %s61 = sphi 0, %s63
    %s64 = sphi 0, %s61
    %s65 = sphi 0, %s64
    %s81 = sphi 0, %s65
    %s87 = sphi 0, %s89
    %s90 = sphi 0, %s87
    %s91 = sphi 0, %s90
    %s107 = sphi 0, %s91
  $region4: #{se_conv_forward.1} parent=0 // loop_header_branch
    %12 = sbr.rel (%p10) target = $region8
  $region5: #{se_conv_forward.1} parent=0 // loop_body
    %s14 = ssub.s32 %s9, 1
    %s15 = ssub.s32 %s9, 2
    %s16 = sadd.s32 %s9, 1
    %s18 = sadd.s32 %s17, 1
    %p21 = scmp.eq.s32.totalorder %s9, 1
    %p22 = scmp.ne.s32.totalorder %s17, %s19
    %p23 = scmp.eq.s32.totalorder %s9, 0
    %p24 = por %p22, %p23
    %p25 = scmp.ne.s32.totalorder %s17, %s19
    %p26 = scmp.eq.s32.totalorder %s14, 1
    %p27 = por %p25, %p26
    %p28 = scmp.ne.s32.totalorder %s19, %s20
    %p29 = scmp.eq.s32.totalorder %s14, 0
    %p30 = por %p28, %p29
    %p31 = scmp.ne.s32.totalorder %s19, %s20
    %p32 = scmp.eq.s32.totalorder %s15, 1
    %p33 = por %p31, %p32
    %p35 = scmp.ne.s32.totalorder %s20, %s34
    %p36 = scmp.eq.s32.totalorder %s15, 0
    %p37 = por %p35, %p36
    %s39 = sadd.s32 %s38, 1
    %p42 = scmp.eq.s32.totalorder %s9, 1
    %p43 = scmp.ne.s32.totalorder %s38, %s40
    %p44 = scmp.eq.s32.totalorder %s9, 0
    %p45 = por %p43, %p44
    %p46 = scmp.ne.s32.totalorder %s38, %s40
    %p47 = scmp.eq.s32.totalorder %s14, 1
    %p48 = por %p46, %p47
    %p49 = scmp.ne.s32.totalorder %s40, %s41
    %p50 = scmp.eq.s32.totalorder %s14, 0
    %p51 = por %p49, %p50
    %p52 = scmp.ne.s32.totalorder %s40, %s41
    %p53 = scmp.eq.s32.totalorder %s15, 1
    %p54 = por %p52, %p53
    %p56 = scmp.ne.s32.totalorder %s41, %s55
    %p57 = scmp.eq.s32.totalorder %s15, 0
    %p58 = por %p56, %p57
    %s59 = ssub.s32 %s9, %s16
    %p60 = scmp.eq.s32.totalorder %s59, 0
    %s62 = sadd.s32 %s61, 1
    %s63 = scalar_select %p60, %s61, %s62
    %p66 = pneg %p60
    %p67 = scmp.eq.s32.totalorder %s9, 1
    %p68 = por %p66, %p67
    %p69 = scmp.ne.s32.totalorder %s61, %s64
    %p70 = scmp.eq.s32.totalorder %s9, 0
    %p71 = por %p69, %p70
    %p72 = scmp.ne.s32.totalorder %s61, %s64
    %p73 = scmp.eq.s32.totalorder %s14, 1
    %p74 = por %p72, %p73
    %p75 = scmp.ne.s32.totalorder %s64, %s65
    %p76 = scmp.eq.s32.totalorder %s14, 0
    %p77 = por %p75, %p76
    %p78 = scmp.ne.s32.totalorder %s64, %s65
    %p79 = scmp.eq.s32.totalorder %s15, 1
    %p80 = por %p78, %p79
    %p82 = scmp.ne.s32.totalorder %s65, %s81
    %p83 = scmp.eq.s32.totalorder %s15, 0
    %p84 = por %p82, %p83
    %s85 = ssub.s32 %s9, %s16
    %p86 = scmp.eq.s32.totalorder %s85, 0
    %s88 = sadd.s32 %s87, 1
    %s89 = scalar_select %p86, %s87, %s88
    %p92 = pneg %p86
    %p93 = scmp.eq.s32.totalorder %s9, 1
    %p94 = por %p92, %p93
    %p95 = scmp.ne.s32.totalorder %s87, %s90
    %p96 = scmp.eq.s32.totalorder %s9, 0
    %p97 = por %p95, %p96
    %p98 = scmp.ne.s32.totalorder %s87, %s90
    %p99 = scmp.eq.s32.totalorder %s14, 1
    %p100 = por %p98, %p99
    %p101 = scmp.ne.s32.totalorder %s90, %s91
    %p102 = scmp.eq.s32.totalorder %s14, 0
    %p103 = por %p101, %p102
    %p104 = scmp.ne.s32.totalorder %s90, %s91
    %p105 = scmp.eq.s32.totalorder %s15, 1
    %p106 = por %p104, %p105
    %p108 = scmp.ne.s32.totalorder %s91, %s107
    %p109 = scmp.eq.s32.totalorder %s15, 0
    %p110 = por %p108, %p109
    %p111 = scmp.le.s32.totalorder 1, %s9
    %p112 = scmp.lt.s32.totalorder %s9, 3
    %p113 = pnand %p111, %p112
    %p114 = pneg %p113
    // Predicated region
    $region9: #{se_conv_forward.1} parent=5 // pred_check
      _
    $region10: #{se_conv_forward.1} parent=5 // pred_check_branch
      %116 = sbr.rel (%p113) target = $region12
    $region11: #{se_conv_forward.1} parent=5 // pred_region
      %s117 = ssub.s32 %s9, 1
      // Predicated region
      $region13: #{se_conv_forward.1} parent=11 // pred_check
        %p118 = pneg %p30
      $region14: #{se_conv_forward.1} parent=11 // pred_check_branch
        %120 = sbr.rel (%p118) target = $region16
      $region15: #{se_conv_forward.1} parent=11 // pred_region
        _
      $region16: #{se_conv_forward.1} parent=11 // pred_fallthru
        _
      // Predicated region
      $region17: #{se_conv_forward.1} parent=11 // pred_check
        %p121 = pneg %p51
      $region18: #{se_conv_forward.1} parent=11 // pred_check_branch
        %123 = sbr.rel (%p121) target = $region20
      $region19: #{se_conv_forward.1} parent=11 // pred_region
        _
      $region20: #{se_conv_forward.1} parent=11 // pred_fallthru
        _
    $region12: #{se_conv_forward.1} parent=5 // pred_fallthru
      _
    %p124 = scmp.lt.s32.totalorder %s9, 2
    // Predicated region
    $region21: #{se_conv_forward.1} parent=5 // pred_check
      %p125 = pneg %p124
    $region22: #{se_conv_forward.1} parent=5 // pred_check_branch
      %127 = sbr.rel (%p125) target = $region24
    $region23: #{se_conv_forward.1} parent=5 // pred_region
      // Predicated region
      $region25: #{se_conv_forward.1} parent=23 // pred_check
        %p128 = pneg %p71
      $region26: #{se_conv_forward.1} parent=23 // pred_check_branch
        %130 = sbr.rel (%p128) target = $region28
      $region27: #{se_conv_forward.1} parent=23 // pred_region
        %s131 = smul.u32 22, %s9
        %p132 = scmp.lt.s32.totalorder %s131, 43
        %s133 = scalar_select %p132, %s131, 43
        %s134 = smul.addr %s133, 3
        %s135 = smul.addr %s134, 4
        %s136 = scalar_lea.vmem %s2, %s135
        %s137 = smul.u32 22, %s9
      $region28: #{se_conv_forward.1} parent=23 // pred_fallthru
        _
    $region24: #{se_conv_forward.1} parent=5 // pred_fallthru
      _
    %p138 = scmp.le.s32.totalorder 1, %s9
    %p139 = scmp.lt.s32.totalorder %s9, 3
    %p140 = pnand %p138, %p139
    %p141 = pneg %p140
    // Predicated region
    $region29: #{se_conv_forward.1} parent=5 // pred_check
      _
    $region30: #{se_conv_forward.1} parent=5 // pred_check_branch
      %143 = sbr.rel (%p140) target = $region32
    $region31: #{se_conv_forward.1} parent=5 // pred_region
      %s144 = ssub.s32 %s9, 1
      %p145 = pneg %p30
      %p146 = pneg %p27
      %p147 = pneg %p51
      %p148 = pneg %p48
      %s149 = smul.u32 22, %s14
      %p150 = scmp.lt.s32.totalorder %s149, 43
      %s151 = scalar_select %p150, %s149, 43
      %s152 = smul.addr %s151, 3
      %s153 = smul.addr %s152, 4
      %s154 = scalar_lea.vmem %s2, %s153
      %p155 = pneg %p77
      %p156 = pneg %p74
      %p157 = pneg %p103
      %p158 = pneg %p100
      %s159 = smul.u32 22, %s14
      %p160 = scmp.lt.s32.totalorder %s159, 43
      %s161 = scalar_select %p160, %s159, 43
      %s162 = smul.addr %s161, 2
      %s163 = smul.addr %s162, 8
      %s164 = scalar_lea.vmem %s3, %s163
      %s165 = smul.u32 22, %s14
      %p166 = scmp.lt.s32.totalorder %s165, 43
      %s167 = scalar_select %p166, %s165, 43
      %s168 = smul.addr %s167, 3
      %s169 = smul.addr %s168, 4
      %s170 = scalar_lea.vmem %s2, %s169
      %s171 = smul.u32 22, %s14
      %s172 = smul.u32 22, %s14
      %p173 = scmp.lt.s32.totalorder %s172, 43
      %s174 = scalar_select %p173, %s172, 43
      %s175 = smul.addr %s174, 2
      %s176 = smul.addr %s175, 8
      %s177 = scalar_lea.vmem %s3, %s176
      %s178 = smul.u32 22, %s14
      %v180 = vld [vmem:[%s1] sm:$0xff]
      %v181 = vld [vmem:[%s1 + $0x8] sm:$0xff]
      %v182 = vld [vmem:[%s1 + $0x10] sm:$0xff]
      %v183 = vld [vmem:[%s1 + $0x18] sm:$0xff]
      %v184 = vld [vmem:[%s1 + $0x20] sm:$0xff]
      %v185 = vld [vmem:[%s1 + $0x28] sm:$0xff]
      %v186 = vld [vmem:[%s1 + $0x30] sm:$0xff]
      %v187 = vld [vmem:[%s1 + $0x38] sm:$0xff]
      %v188 = vld [vmem:[%s1 + $0x40] sm:$0xff]
      %v189 = vld [vmem:[%s1 + $0x48] sm:$0xff]
      %v190 = vld [vmem:[%s1 + $0x50] sm:$0xff]
      %v191 = vld [vmem:[%s1 + $0x58] sm:$0xff]
      %v192 = vld [vmem:[%s1 + $0x60] sm:$0xff]
      %v193 = vld [vmem:[%s1 + $0x68] sm:$0xff]
      %v194 = vld [vmem:[%s1 + $0x70] sm:$0xff]
      %v195 = vld [vmem:[%s1 + $0x78] sm:$0xff]
      %v196 = vld [vmem:[%s1 + $0x80] sm:$0xff]
      %v197 = vld [vmem:[%s1 + $0x88] sm:$0xff]
      %v198 = vld [vmem:[%s1 + $0x90] sm:$0xff]
      %v199 = vld [vmem:[%s1 + $0x98] sm:$0xff]
      %v200 = vld [vmem:[%s1 + $0xa0] sm:$0xff]
      %v201 = vld [vmem:[%s1 + $0xa8] sm:$0xff]
      %v202 = vld [vmem:[%s1 + $0xb0] sm:$0xff]
      %v203 = vld [vmem:[%s1 + $0xb8] sm:$0xff]
      %v204 = vld [vmem:[%s1 + $0xc0] sm:$0xff]
      %v205 = vld [vmem:[%s1 + $0xc8] sm:$0xff]
      %v206 = vld [vmem:[%s1 + $0xd0] sm:$0xff]
      %v207 = vld [vmem:[%s1 + $0xd8] sm:$0xff]
      %v208 = vld [vmem:[%s1 + $0xe0] sm:$0xff]
      %v209 = vld [vmem:[%s1 + $0xe8] sm:$0xff]
      %v210 = vld [vmem:[%s1 + $0xf0] sm:$0xff]
      %v211 = vld [vmem:[%s1 + $0xf8] sm:$0xff]
      %v212 = vld [vmem:[%s1 + $0x100] sm:$0xff]
      %v213 = vld [vmem:[%s1 + $0x108] sm:$0xff]
      %v214 = vld [vmem:[%s1 + $0x110] sm:$0xff]
      %v215 = vld [vmem:[%s1 + $0x118] sm:$0xff]
      %v216 = vld [vmem:[%s1 + $0x120] sm:$0xff]
      %v217 = vld [vmem:[%s1 + $0x128] sm:$0xff]
      %v218 = vld [vmem:[%s1 + $0x130] sm:$0xff]
      %v219 = vld [vmem:[%s1 + $0x138] sm:$0xff]
      %v220 = vld [vmem:[%s1 + $0x140] sm:$0xff]
      %v221 = vld [vmem:[%s1 + $0x148] sm:$0xff]
      %v222 = vld [vmem:[%s1 + $0x150] sm:$0xff]
      %v223 = vld [vmem:[%s1 + $0x158] sm:$0xff]
      %v224 = vld [vmem:[%s1 + $0x160] sm:$0xff]
      %v225 = vld [vmem:[%s1 + $0x168] sm:$0xff]
      %v226 = vld [vmem:[%s1 + $0x170] sm:$0xff]
      %v227 = vld [vmem:[%s1 + $0x178] sm:$0xff]
      %v228 = vld [vmem:[%s1 + $0x180] sm:$0xff]
      %v229 = vld [vmem:[%s1 + $0x188] sm:$0xff]
      %v230 = vld [vmem:[%s1 + $0x190] sm:$0xff]
      %v231 = vld [vmem:[%s1 + $0x198] sm:$0xff]
      %v232 = vld [vmem:[%s1 + $0x1a0] sm:$0xff]
      %v233 = vld [vmem:[%s1 + $0x1a8] sm:$0xff]
      %v234 = vld [vmem:[%s1 + $0x1b0] sm:$0xff]
      %v235 = vld [vmem:[%s1 + $0x1b8] sm:$0xff]
      %v236 = vld [vmem:[%s1 + $0x1c0] sm:$0xff]
      %v237 = vld [vmem:[%s1 + $0x1c8] sm:$0xff]
      %v238 = vld [vmem:[%s1 + $0x1d0] sm:$0xff]
      %v239 = vld [vmem:[%s1 + $0x1d8] sm:$0xff]
      %v240 = vld [vmem:[%s1 + $0x1e0] sm:$0xff]
      %v241 = vld [vmem:[%s1 + $0x1e8] sm:$0xff]
      %v242 = vld [vmem:[%s1 + $0x1f0] sm:$0xff]
      %v243 = vld [vmem:[%s1 + $0x1f8] sm:$0xff]
      %v244 = vld [vmem:[%s1 + $0x200] sm:$0xff]
      %v245 = vld [vmem:[%s1 + $0x208] sm:$0xff]
      %v246 = vld [vmem:[%s1 + $0x210] sm:$0xff]
      %v247 = vld [vmem:[%s1 + $0x218] sm:$0xff]
      %v248 = vld [vmem:[%s1 + $0x220] sm:$0xff]
      %v249 = vld [vmem:[%s1 + $0x228] sm:$0xff]
      %v250 = vld [vmem:[%s1 + $0x230] sm:$0xff]
      %v251 = vld [vmem:[%s1 + $0x238] sm:$0xff]
      %v252 = vld [vmem:[%s1 + $0x240] sm:$0xff]
      %v253 = vld [vmem:[%s1 + $0x248] sm:$0xff]
      %v254 = vld [vmem:[%s1 + $0x250] sm:$0xff]
      %v255 = vld [vmem:[%s1 + $0x258] sm:$0xff]
      %v256 = vld [vmem:[%s1 + $0x260] sm:$0xff]
      %v257 = vld [vmem:[%s1 + $0x268] sm:$0xff]
      %v258 = vld [vmem:[%s1 + $0x270] sm:$0xff]
      %v259 = vld [vmem:[%s1 + $0x278] sm:$0xff]
      %v260 = vld [vmem:[%s1 + $0x280] sm:$0xff]
      %v261 = vld [vmem:[%s1 + $0x288] sm:$0xff]
      %v262 = vld [vmem:[%s1 + $0x290] sm:$0xff]
      %v263 = vld [vmem:[%s1 + $0x298] sm:$0xff]
      %v264 = vld [vmem:[%s1 + $0x2a0] sm:$0xff]
      %v265 = vld [vmem:[%s1 + $0x2a8] sm:$0xff]
      %v266 = vld [vmem:[%s0] sm:$0xff]
      %v267 = vld [vmem:[%s0 + $0x8] sm:$0xff]
      %v268 = vld [vmem:[%s0 + $0x10] sm:$0xff]
      %v269 = vld [vmem:[%s0 + $0x18] sm:$0xff]
      %v270 = vld [vmem:[%s0 + $0x20] sm:$0xff]
      %v271 = vld [vmem:[%s0 + $0x28] sm:$0xff]
      %v272 = vld [vmem:[%s0 + $0x30] sm:$0xff]
      %v273 = vld [vmem:[%s0 + $0x38] sm:$0xff]
      %v274 = vld [vmem:[%s0 + $0x40] sm:$0xff]
      %v275 = vld [vmem:[%s0 + $0x48] sm:$0xff]
      %v276 = vld [vmem:[%s0 + $0x50] sm:$0xff]
      %v277 = vld [vmem:[%s0 + $0x58] sm:$0xff]
      %v278 = vld [vmem:[%s0 + $0x60] sm:$0xff]
      %v279 = vld [vmem:[%s0 + $0x68] sm:$0xff]
      %v280 = vld [vmem:[%s0 + $0x70] sm:$0xff]
      %v281 = vld [vmem:[%s0 + $0x78] sm:$0xff]
      %v282 = vld [vmem:[%s0 + $0x80] sm:$0xff]
      %v283 = vld [vmem:[%s0 + $0x88] sm:$0xff]
      %v284 = vld [vmem:[%s0 + $0x90] sm:$0xff]
      %v285 = vld [vmem:[%s0 + $0x98] sm:$0xff]
      %v286 = vld [vmem:[%s0 + $0xa0] sm:$0xff]
      %v287 = vld [vmem:[%s0 + $0xa8] sm:$0xff]
      %v288 = vld [vmem:[%s0 + $0xb0] sm:$0xff]
      %v289 = vld [vmem:[%s0 + $0xb8] sm:$0xff]
      %v290 = vld [vmem:[%s0 + $0xc0] sm:$0xff]
      %v291 = vld [vmem:[%s0 + $0xc8] sm:$0xff]
      %v292 = vld [vmem:[%s0 + $0xd0] sm:$0xff]
      %v293 = vld [vmem:[%s0 + $0xd8] sm:$0xff]
      %v294 = vld [vmem:[%s0 + $0xe0] sm:$0xff]
      %v295 = vld [vmem:[%s0 + $0xe8] sm:$0xff]
      %v296 = vld [vmem:[%s0 + $0xf0] sm:$0xff]
      %v297 = vld [vmem:[%s0 + $0xf8] sm:$0xff]
      %v298 = vld [vmem:[%s0 + $0x100] sm:$0xff]
      %v299 = vld [vmem:[%s0 + $0x108] sm:$0xff]
      %v300 = vld [vmem:[%s0 + $0x110] sm:$0xff]
      %v301 = vld [vmem:[%s0 + $0x118] sm:$0xff]
      %v302 = vld [vmem:[%s0 + $0x120] sm:$0xff]
      %v303 = vld [vmem:[%s0 + $0x128] sm:$0xff]
      %v304 = vld [vmem:[%s0 + $0x130] sm:$0xff]
      %v305 = vld [vmem:[%s0 + $0x138] sm:$0xff]
      %v306 = vld [vmem:[%s0 + $0x140] sm:$0xff]
      %v307 = vld [vmem:[%s0 + $0x148] sm:$0xff]
      %v308 = vld [vmem:[%s0 + $0x150] sm:$0xff]
      %310 = vset.pattern.permute.xlu0 0
      %311 = vperm.xlu0 %310, %v266
      %v312 = vpop.permute.xlu0 %311
      %315 = vset.pattern.permute.xlu0 0
      %316 = vperm.xlu0 %315, %v267
      %v317 = vpop.permute.xlu0 %316
      %320 = vset.pattern.permute.xlu0 0
      %321 = vperm.xlu0 %320, %v268
      %v322 = vpop.permute.xlu0 %321
      %325 = vset.pattern.permute.xlu0 0
      %326 = vperm.xlu0 %325, %v269
      %v327 = vpop.permute.xlu0 %326
      %330 = vset.pattern.permute.xlu0 0
      %331 = vperm.xlu0 %330, %v270
      %v332 = vpop.permute.xlu0 %331
      %335 = vset.pattern.permute.xlu0 0
      %336 = vperm.xlu0 %335, %v271
      %v337 = vpop.permute.xlu0 %336
      %340 = vset.pattern.permute.xlu0 0
      %341 = vperm.xlu0 %340, %v272
      %v342 = vpop.permute.xlu0 %341
      %345 = vset.pattern.permute.xlu0 0
      %346 = vperm.xlu0 %345, %v273
      %v347 = vpop.permute.xlu0 %346
      %350 = vset.pattern.permute.xlu0 0
      %351 = vperm.xlu0 %350, %v274
      %v352 = vpop.permute.xlu0 %351
      %355 = vset.pattern.permute.xlu0 0
      %356 = vperm.xlu0 %355, %v275
      %v357 = vpop.permute.xlu0 %356
      %360 = vset.pattern.permute.xlu0 0
      %361 = vperm.xlu0 %360, %v276
      %v362 = vpop.permute.xlu0 %361
      %365 = vset.pattern.permute.xlu0 0
      %366 = vperm.xlu0 %365, %v277
      %v367 = vpop.permute.xlu0 %366
      %370 = vset.pattern.permute.xlu0 0
      %371 = vperm.xlu0 %370, %v278
      %v372 = vpop.permute.xlu0 %371
      %375 = vset.pattern.permute.xlu0 0
      %376 = vperm.xlu0 %375, %v279
      %v377 = vpop.permute.xlu0 %376
      %380 = vset.pattern.permute.xlu0 0
      %381 = vperm.xlu0 %380, %v280
      %v382 = vpop.permute.xlu0 %381
      %385 = vset.pattern.permute.xlu0 0
      %386 = vperm.xlu0 %385, %v281
      %v387 = vpop.permute.xlu0 %386
      %390 = vset.pattern.permute.xlu0 0
      %391 = vperm.xlu0 %390, %v282
      %v392 = vpop.permute.xlu0 %391
      %395 = vset.pattern.permute.xlu0 0
      %396 = vperm.xlu0 %395, %v283
      %v397 = vpop.permute.xlu0 %396
      %400 = vset.pattern.permute.xlu0 0
      %401 = vperm.xlu0 %400, %v284
      %v402 = vpop.permute.xlu0 %401
      %405 = vset.pattern.permute.xlu0 0
      %406 = vperm.xlu0 %405, %v285
      %v407 = vpop.permute.xlu0 %406
      %410 = vset.pattern.permute.xlu0 0
      %411 = vperm.xlu0 %410, %v286
      %v412 = vpop.permute.xlu0 %411
      %415 = vset.pattern.permute.xlu0 0
      %416 = vperm.xlu0 %415, %v287
      %v417 = vpop.permute.xlu0 %416
      %420 = vset.pattern.permute.xlu0 0
      %421 = vperm.xlu0 %420, %v288
      %v422 = vpop.permute.xlu0 %421
      %425 = vset.pattern.permute.xlu0 0
      %426 = vperm.xlu0 %425, %v289
      %v427 = vpop.permute.xlu0 %426
      %430 = vset.pattern.permute.xlu0 0
      %431 = vperm.xlu0 %430, %v290
      %v432 = vpop.permute.xlu0 %431
      %435 = vset.pattern.permute.xlu0 0
      %436 = vperm.xlu0 %435, %v291
      %v437 = vpop.permute.xlu0 %436
      %440 = vset.pattern.permute.xlu0 0
      %441 = vperm.xlu0 %440, %v292
      %v442 = vpop.permute.xlu0 %441
      %445 = vset.pattern.permute.xlu0 0
      %446 = vperm.xlu0 %445, %v293
      %v447 = vpop.permute.xlu0 %446
      %450 = vset.pattern.permute.xlu0 0
      %451 = vperm.xlu0 %450, %v294
      %v452 = vpop.permute.xlu0 %451
      %455 = vset.pattern.permute.xlu0 0
      %456 = vperm.xlu0 %455, %v295
      %v457 = vpop.permute.xlu0 %456
      %460 = vset.pattern.permute.xlu0 0
      %461 = vperm.xlu0 %460, %v296
      %v462 = vpop.permute.xlu0 %461
      %465 = vset.pattern.permute.xlu0 0
      %466 = vperm.xlu0 %465, %v297
      %v467 = vpop.permute.xlu0 %466
      %470 = vset.pattern.permute.xlu0 0
      %471 = vperm.xlu0 %470, %v298
      %v472 = vpop.permute.xlu0 %471
      %475 = vset.pattern.permute.xlu0 0
      %476 = vperm.xlu0 %475, %v299
      %v477 = vpop.permute.xlu0 %476
      %480 = vset.pattern.permute.xlu0 0
      %481 = vperm.xlu0 %480, %v300
      %v482 = vpop.permute.xlu0 %481
      %485 = vset.pattern.permute.xlu0 0
      %486 = vperm.xlu0 %485, %v301
      %v487 = vpop.permute.xlu0 %486
      %490 = vset.pattern.permute.xlu0 0
      %491 = vperm.xlu0 %490, %v302
      %v492 = vpop.permute.xlu0 %491
      %495 = vset.pattern.permute.xlu0 0
      %496 = vperm.xlu0 %495, %v303
      %v497 = vpop.permute.xlu0 %496
      %500 = vset.pattern.permute.xlu0 0
      %501 = vperm.xlu0 %500, %v304
      %v502 = vpop.permute.xlu0 %501
      %505 = vset.pattern.permute.xlu0 0
      %506 = vperm.xlu0 %505, %v305
      %v507 = vpop.permute.xlu0 %506
      %510 = vset.pattern.permute.xlu0 0
      %511 = vperm.xlu0 %510, %v306
      %v512 = vpop.permute.xlu0 %511
      %515 = vset.pattern.permute.xlu0 0
      %516 = vperm.xlu0 %515, %v307
      %v517 = vpop.permute.xlu0 %516
      %520 = vset.pattern.permute.xlu0 0
      %521 = vperm.xlu0 %520, %v308
      %v522 = vpop.permute.xlu0 %521
      %v524 = vmul.f32 %v180, %v312
      %v525 = vmul.f32 %v181, %v312
      %v526 = vmul.f32 %v182, %v317
      %v527 = vmul.f32 %v183, %v317
      %v528 = vmul.f32 %v184, %v322
      %v529 = vmul.f32 %v185, %v322
      %v530 = vmul.f32 %v186, %v327
      %v531 = vmul.f32 %v187, %v327
      %v532 = vmul.f32 %v188, %v332
      %v533 = vmul.f32 %v189, %v332
      %v534 = vmul.f32 %v190, %v337
      %v535 = vmul.f32 %v191, %v337
      %v536 = vmul.f32 %v192, %v342
      %v537 = vmul.f32 %v193, %v342
      %v538 = vmul.f32 %v194, %v347
      %v539 = vmul.f32 %v195, %v347
      %v540 = vmul.f32 %v196, %v352
      %v541 = vmul.f32 %v197, %v352
      %v542 = vmul.f32 %v198, %v357
      %v543 = vmul.f32 %v199, %v357
      %v544 = vmul.f32 %v200, %v362
      %v545 = vmul.f32 %v201, %v362
      %v546 = vmul.f32 %v202, %v367
      %v547 = vmul.f32 %v203, %v367
      %v548 = vmul.f32 %v204, %v372
      %v549 = vmul.f32 %v205, %v372
      %v550 = vmul.f32 %v206, %v377
      %v551 = vmul.f32 %v207, %v377
      %v552 = vmul.f32 %v208, %v382
      %v553 = vmul.f32 %v209, %v382
      %v554 = vmul.f32 %v210, %v387
      %v555 = vmul.f32 %v211, %v387
      %v556 = vmul.f32 %v212, %v392
      %v557 = vmul.f32 %v213, %v392
      %v558 = vmul.f32 %v214, %v397
      %v559 = vmul.f32 %v215, %v397
      %v560 = vmul.f32 %v216, %v402
      %v561 = vmul.f32 %v217, %v402
      %v562 = vmul.f32 %v218, %v407
      %v563 = vmul.f32 %v219, %v407
      %v564 = vmul.f32 %v220, %v412
      %v565 = vmul.f32 %v221, %v412
      %v566 = vmul.f32 %v222, %v417
      %v567 = vmul.f32 %v223, %v417
      %v568 = vmul.f32 %v224, %v422
      %v569 = vmul.f32 %v225, %v422
      %v570 = vmul.f32 %v226, %v427
      %v571 = vmul.f32 %v227, %v427
      %v572 = vmul.f32 %v228, %v432
      %v573 = vmul.f32 %v229, %v432
      %v574 = vmul.f32 %v230, %v437
      %v575 = vmul.f32 %v231, %v437
      %v576 = vmul.f32 %v232, %v442
      %v577 = vmul.f32 %v233, %v442
      %v578 = vmul.f32 %v234, %v447
      %v579 = vmul.f32 %v235, %v447
      %v580 = vmul.f32 %v236, %v452
      %v581 = vmul.f32 %v237, %v452
      %v582 = vmul.f32 %v238, %v457
      %v583 = vmul.f32 %v239, %v457
      %v584 = vmul.f32 %v240, %v462
      %v585 = vmul.f32 %v241, %v462
      %v586 = vmul.f32 %v242, %v467
      %v587 = vmul.f32 %v243, %v467
      %v588 = vmul.f32 %v244, %v472
      %v589 = vmul.f32 %v245, %v472
      %v590 = vmul.f32 %v246, %v477
      %v591 = vmul.f32 %v247, %v477
      %v592 = vmul.f32 %v248, %v482
      %v593 = vmul.f32 %v249, %v482
      %v594 = vmul.f32 %v250, %v487
      %v595 = vmul.f32 %v251, %v487
      %v596 = vmul.f32 %v252, %v492
      %v597 = vmul.f32 %v253, %v492
      %v598 = vmul.f32 %v254, %v497
      %v599 = vmul.f32 %v255, %v497
      %v600 = vmul.f32 %v256, %v502
      %v601 = vmul.f32 %v257, %v502
      %v602 = vmul.f32 %v258, %v507
      %v603 = vmul.f32 %v259, %v507
      %v604 = vmul.f32 %v260, %v512
      %v605 = vmul.f32 %v261, %v512
      %v606 = vmul.f32 %v262, %v517
      %v607 = vmul.f32 %v263, %v517
      %v608 = vmul.f32 %v264, %v522
      %v609 = vmul.f32 %v265, %v522
      %v610 = vpack.c.bf16 %v526, %v524
      %v611 = vpack.c.bf16 %v527, %v525
      %v612 = vpack.c.bf16 %v530, %v528
      %v613 = vpack.c.bf16 %v531, %v529
      %v614 = vpack.c.bf16 %v534, %v532
      %v615 = vpack.c.bf16 %v535, %v533
      %v616 = vpack.c.bf16 %v538, %v536
      %v617 = vpack.c.bf16 %v539, %v537
      %v618 = vpack.c.bf16 %v542, %v540
      %v619 = vpack.c.bf16 %v543, %v541
      %v620 = vpack.c.bf16 %v546, %v544
      %v621 = vpack.c.bf16 %v547, %v545
      %v622 = vpack.c.bf16 %v550, %v548
      %v623 = vpack.c.bf16 %v551, %v549
      %v624 = vpack.c.bf16 %v554, %v552
      %v625 = vpack.c.bf16 %v555, %v553
      %v626 = vpack.c.bf16 %v558, %v556
      %v627 = vpack.c.bf16 %v559, %v557
      %v628 = vpack.c.bf16 %v562, %v560
      %v629 = vpack.c.bf16 %v563, %v561
      %v630 = vpack.c.bf16 %v566, %v564
      %v631 = vpack.c.bf16 %v567, %v565
      %v632 = vpack.c.bf16 %v570, %v568
      %v633 = vpack.c.bf16 %v571, %v569
      %v634 = vpack.c.bf16 %v574, %v572
      %v635 = vpack.c.bf16 %v575, %v573
      %v636 = vpack.c.bf16 %v578, %v576
      %v637 = vpack.c.bf16 %v579, %v577
      %v638 = vpack.c.bf16 %v582, %v580
      %v639 = vpack.c.bf16 %v583, %v581
      %v640 = vpack.c.bf16 %v586, %v584
      %v641 = vpack.c.bf16 %v587, %v585
      %v642 = vpack.c.bf16 %v590, %v588
      %v643 = vpack.c.bf16 %v591, %v589
      %v644 = vpack.c.bf16 %v594, %v592
      %v645 = vpack.c.bf16 %v595, %v593
      %v646 = vpack.c.bf16 %v598, %v596
      %v647 = vpack.c.bf16 %v599, %v597
      %v648 = vpack.c.bf16 %v602, %v600
      %v649 = vpack.c.bf16 %v603, %v601
      %v650 = vpack.c.bf16 %v606, %v604
      %v651 = vpack.c.bf16 %v607, %v605
      %v652 = vpack.c.bf16 %v608, %v608
      %v653 = vpack.c.bf16 %v609, %v609
      %v654 = vld [vmem:[%s170] sm:$0xff]
      %v655 = vld [vmem:[%s170 + $0x8] sm:$0xf]
      %v656 = vld [vmem:[%s170 + $0xc] sm:$0xff]
      %v657 = vld [vmem:[%s170 + $0x14] sm:$0xf]
      %v658 = vld [vmem:[%s170 + $0x18] sm:$0xff]
      %v659 = vld [vmem:[%s170 + $0x20] sm:$0xf]
      %v660 = vld [vmem:[%s170 + $0x24] sm:$0xff]
      %v661 = vld [vmem:[%s170 + $0x2c] sm:$0xf]
      %v662 = vld [vmem:[%s170 + $0x30] sm:$0xff]
      %v663 = vld [vmem:[%s170 + $0x38] sm:$0xf]
      %v664 = vld [vmem:[%s170 + $0x3c] sm:$0xff]
      %v665 = vld [vmem:[%s170 + $0x44] sm:$0xf]
      %v666 = vld [vmem:[%s170 + $0x48] sm:$0xff]
      %v667 = vld [vmem:[%s170 + $0x50] sm:$0xf]
      %v668 = vld [vmem:[%s170 + $0x54] sm:$0xff]
      %v669 = vld [vmem:[%s170 + $0x5c] sm:$0xf]
      %v670 = vld [vmem:[%s170 + $0x60] sm:$0xff]
      %v671 = vld [vmem:[%s170 + $0x68] sm:$0xf]
      %v672 = vld [vmem:[%s170 + $0x6c] sm:$0xff]
      %v673 = vld [vmem:[%s170 + $0x74] sm:$0xf]
      %v674 = vld [vmem:[%s170 + $0x78] sm:$0xff]
      %v675 = vld [vmem:[%s170 + $0x80] sm:$0xf]
      %v676 = vld [vmem:[%s170 + $0x84] sm:$0xff]
      %v677 = vld [vmem:[%s170 + $0x8c] sm:$0xf]
      %v678 = vld [vmem:[%s170 + $0x90] sm:$0xff]
      %v679 = vld [vmem:[%s170 + $0x98] sm:$0xf]
      %v680 = vld [vmem:[%s170 + $0x9c] sm:$0xff]
      %v681 = vld [vmem:[%s170 + $0xa4] sm:$0xf]
      %v682 = vld [vmem:[%s170 + $0xa8] sm:$0xff]
      %v683 = vld [vmem:[%s170 + $0xb0] sm:$0xf]
      %v684 = vld [vmem:[%s170 + $0xb4] sm:$0xff]
      %v685 = vld [vmem:[%s170 + $0xbc] sm:$0xf]
      %v686 = vld [vmem:[%s170 + $0xc0] sm:$0xff]
      %v687 = vld [vmem:[%s170 + $0xc8] sm:$0xf]
      %v688 = vld [vmem:[%s170 + $0xcc] sm:$0xff]
      %v689 = vld [vmem:[%s170 + $0xd4] sm:$0xf]
      %v690 = vld [vmem:[%s170 + $0xd8] sm:$0xff]
      %v691 = vld [vmem:[%s170 + $0xe0] sm:$0xf]
      %v692 = vld [vmem:[%s170 + $0xe4] sm:$0xff]
      %v693 = vld [vmem:[%s170 + $0xec] sm:$0xf]
      %v694 = vld [vmem:[%s170 + $0xf0] sm:$0xff]
      %v695 = vld [vmem:[%s170 + $0xf8] sm:$0xf]
      %v696 = vld [vmem:[%s170 + $0xfc] sm:$0xff]
      %v697 = vld [vmem:[%s170 + $0x104] sm:$0xf]
      %v742 = vunpack.c.l.b16 %v654
      %v743 = vunpack.c.h.b16 %v654
      %v744 = vunpack.c.l.b16 %v655
      %v745 = vunpack.c.l.b16 %v656
      %v746 = vunpack.c.h.b16 %v656
      %v747 = vunpack.c.l.b16 %v657
      %v748 = vunpack.c.l.b16 %v658
      %v749 = vunpack.c.h.b16 %v658
      %v750 = vunpack.c.l.b16 %v659
      %v751 = vunpack.c.l.b16 %v660
      %v752 = vunpack.c.h.b16 %v660
      %v753 = vunpack.c.l.b16 %v661
      %v754 = vunpack.c.l.b16 %v662
      %v755 = vunpack.c.h.b16 %v662
      %v756 = vunpack.c.l.b16 %v663
      %v757 = vunpack.c.l.b16 %v664
      %v758 = vunpack.c.h.b16 %v664
      %v759 = vunpack.c.l.b16 %v665
      %v760 = vunpack.c.l.b16 %v666
      %v761 = vunpack.c.h.b16 %v666
      %v762 = vunpack.c.l.b16 %v667
      %v763 = vunpack.c.l.b16 %v668
      %v764 = vunpack.c.h.b16 %v668
      %v765 = vunpack.c.l.b16 %v669
      %v766 = vunpack.c.l.b16 %v670
      %v767 = vunpack.c.h.b16 %v670
      %v768 = vunpack.c.l.b16 %v671
      %v769 = vunpack.c.l.b16 %v672
      %v770 = vunpack.c.h.b16 %v672
      %v771 = vunpack.c.l.b16 %v673
      %v772 = vunpack.c.l.b16 %v674
      %v773 = vunpack.c.h.b16 %v674
      %v774 = vunpack.c.l.b16 %v675
      %v775 = vunpack.c.l.b16 %v676
      %v776 = vunpack.c.h.b16 %v676
      %v777 = vunpack.c.l.b16 %v677
      %v778 = vunpack.c.l.b16 %v678
      %v779 = vunpack.c.h.b16 %v678
      %v780 = vunpack.c.l.b16 %v679
      %v781 = vunpack.c.l.b16 %v680
      %v782 = vunpack.c.h.b16 %v680
      %v783 = vunpack.c.l.b16 %v681
      %v784 = vunpack.c.l.b16 %v682
      %v785 = vunpack.c.h.b16 %v682
      %v786 = vunpack.c.l.b16 %v683
      %v787 = vunpack.c.l.b16 %v684
      %v788 = vunpack.c.h.b16 %v684
      %v789 = vunpack.c.l.b16 %v685
      %v790 = vunpack.c.l.b16 %v686
      %v791 = vunpack.c.h.b16 %v686
      %v792 = vunpack.c.l.b16 %v687
      %v793 = vunpack.c.l.b16 %v688
      %v794 = vunpack.c.h.b16 %v688
      %v795 = vunpack.c.l.b16 %v689
      %v796 = vunpack.c.l.b16 %v690
      %v797 = vunpack.c.h.b16 %v690
      %v798 = vunpack.c.l.b16 %v691
      %v799 = vunpack.c.l.b16 %v692
      %v800 = vunpack.c.h.b16 %v692
      %v801 = vunpack.c.l.b16 %v693
      %v802 = vunpack.c.l.b16 %v694
      %v803 = vunpack.c.h.b16 %v694
      %v804 = vunpack.c.l.b16 %v695
      %v805 = vunpack.c.l.b16 %v696
      %v806 = vunpack.c.h.b16 %v696
      %v807 = vunpack.c.l.b16 %v697
      %v808 = vpack.c.b16 %v745, %v742
      %v809 = vpack.c.b16 %v746, %v743
      %v810 = vpack.c.b16 %v747, %v744
      %v811 = vpack.c.b16 %v751, %v748
      %v812 = vpack.c.b16 %v752, %v749
      %v813 = vpack.c.b16 %v753, %v750
      %v814 = vpack.c.b16 %v757, %v754
      %v815 = vpack.c.b16 %v758, %v755
      %v816 = vpack.c.b16 %v759, %v756
      %v817 = vpack.c.b16 %v763, %v760
      %v818 = vpack.c.b16 %v764, %v761
      %v819 = vpack.c.b16 %v765, %v762
      %v820 = vpack.c.b16 %v769, %v766
      %v821 = vpack.c.b16 %v770, %v767
      %v822 = vpack.c.b16 %v771, %v768
      %v823 = vpack.c.b16 %v775, %v772
      %v824 = vpack.c.b16 %v776, %v773
      %v825 = vpack.c.b16 %v777, %v774
      %v826 = vpack.c.b16 %v781, %v778
      %v827 = vpack.c.b16 %v782, %v779
      %v828 = vpack.c.b16 %v783, %v780
      %v829 = vpack.c.b16 %v787, %v784
      %v830 = vpack.c.b16 %v788, %v785
      %v831 = vpack.c.b16 %v789, %v786
      %v832 = vpack.c.b16 %v793, %v790
      %v833 = vpack.c.b16 %v794, %v791
      %v834 = vpack.c.b16 %v795, %v792
      %v835 = vpack.c.b16 %v799, %v796
      %v836 = vpack.c.b16 %v800, %v797
      %v837 = vpack.c.b16 %v801, %v798
      %v838 = vpack.c.b16 %v805, %v802
      %v839 = vpack.c.b16 %v806, %v803
      %v840 = vpack.c.b16 %v807, %v804
      %vm863 = vcmask 719872
      %v865 = vsel %vm863, %v810, 0
      %v868 = vsel %vm863, %v813, 0
      %v871 = vsel %vm863, %v816, 0
      %v874 = vsel %vm863, %v819, 0
      %v877 = vsel %vm863, %v822, 0
      %v880 = vsel %vm863, %v825, 0
      %v883 = vsel %vm863, %v828, 0
      %v886 = vsel %vm863, %v831, 0
      %v889 = vsel %vm863, %v834, 0
      %v892 = vsel %vm863, %v837, 0
      %v895 = vsel %vm863, %v840, 0
      %vm897 = vcmask 1043456
      %v899 = vsel %vm897, %v652, 0
      %v902 = vsel %vm897, %v653, 0
      %904 = vmatprep.subr.bf16.mxu0 %v611
      %905 = vmatpush1.bf16.msra.mxu0 %v610
      %906 = vmatprep.subr.bf16.mxu0 %v613
      %907 = vmatpush1.bf16.msra.mxu0 %v612
      %908 = vmatprep.subr.bf16.mxu0 %v615
      %909 = vmatpush1.bf16.msra.mxu0 %v614
      %910 = vmatprep.subr.bf16.mxu0 %v617
      %911 = vmatpush1.bf16.msra.mxu0 %v616
      %912 = vmatprep.subr.bf16.mxu0 %v619
      %913 = vmatpush1.bf16.msra.mxu0 %v618
      %914 = vmatprep.subr.bf16.mxu0 %v621
      %915 = vmatpush1.bf16.msra.mxu0 %v620
      %916 = vmatprep.subr.bf16.mxu0 %v623
      %917 = vmatpush1.bf16.msra.mxu0 %v622
      %918 = vmatprep.subr.bf16.mxu0 %v625
      %919 = vmatpush1.bf16.msra.mxu0 %v624
      %920 = vmatprep.subr.bf16.mxu0 %v627
      %921 = vmatpush1.bf16.msra.mxu0 %v626
      %922 = vmatprep.subr.bf16.mxu0 %v629
      %923 = vmatpush1.bf16.msra.mxu0 %v628
      %924 = vmatprep.subr.bf16.mxu0 %v631
      %925 = vmatpush1.bf16.msra.mxu0 %v630
      %926 = vmatprep.subr.bf16.mxu0 %v633
      %927 = vmatpush1.bf16.msra.mxu0 %v632
      %928 = vmatprep.subr.bf16.mxu0 %v635
      %929 = vmatpush1.bf16.msra.mxu0 %v634
      %930 = vmatprep.subr.bf16.mxu0 %v637
      %931 = vmatpush1.bf16.msra.mxu0 %v636
      %932 = vmatprep.subr.bf16.mxu0 %v639
      %933 = vmatpush1.bf16.msra.mxu0 %v638
      %934 = vmatprep.subr.bf16.mxu0 %v641
      %935 = vmatpush1.bf16.msra.mxu0 %v640
      %936 = vmatprep.mubr.bf16.mxu0 %v809
      %937 = vmatmul.mubr.bf16.gmra.mrb[0].mxu0 %v808
      %v938 = vpop.f32.mrb[0].mxu0
      %v939 = vadd.f32 0.0, %v938
      %v940 = vpop.f32.mrb[0].mxu0
      %v941 = vadd.f32 0.0, %v940
      %v942 = vpop.f32.mrb[0].mxu0
      %v943 = vadd.f32 0.0, %v942
      %v944 = vpop.f32.mrb[0].mxu0
      %v945 = vadd.f32 0.0, %v944
      %946 = vmatprep.mubr.bf16.mxu0 %v812
      %947 = vmatmul.mubr.bf16.gmra.mrb[0].mxu0 %v811
      %v948 = vpop.f32.mrb[0].mxu0
      %v949 = vadd.f32 0.0, %v948
      %v950 = vpop.f32.mrb[0].mxu0
      %v951 = vadd.f32 0.0, %v950
      %v952 = vpop.f32.mrb[0].mxu0
      %v953 = vadd.f32 0.0, %v952
      %v954 = vpop.f32.mrb[0].mxu0
      %v955 = vadd.f32 0.0, %v954
      %956 = vmatprep.mubr.bf16.mxu0 %v815
      %957 = vmatmul.mubr.bf16.gmra.mrb[0].mxu0 %v814
      %v958 = vpop.f32.mrb[0].mxu0
      %v959 = vadd.f32 0.0, %v958
      %v960 = vpop.f32.mrb[0].mxu0
      %v961 = vadd.f32 0.0, %v960
      %v962 = vpop.f32.mrb[0].mxu0
      %v963 = vadd.f32 0.0, %v962
      %v964 = vpop.f32.mrb[0].mxu0
      %v965 = vadd.f32 0.0, %v964
      %966 = vmatprep.mubr.bf16.mxu0 %v818
      %967 = vmatmul.mubr.bf16.gmra.mrb[0].mxu0 %v817
      %v968 = vpop.f32.mrb[0].mxu0
      %v969 = vadd.f32 0.0, %v968
      %v970 = vpop.f32.mrb[0].mxu0
      %v971 = vadd.f32 0.0, %v970
      %v972 = vpop.f32.mrb[0].mxu0
      %v973 = vadd.f32 0.0, %v972
      %v974 = vpop.f32.mrb[0].mxu0
      %v975 = vadd.f32 0.0, %v974
      %976 = vmatprep.mubr.bf16.mxu0 %v821
      %977 = vmatmul.mubr.bf16.gmra.mrb[0].mxu0 %v820
      %v978 = vpop.f32.mrb[0].mxu0
      %v979 = vadd.f32 0.0, %v978
      %v980 = vpop.f32.mrb[0].mxu0
      %v981 = vadd.f32 0.0, %v980
      %v982 = vpop.f32.mrb[0].mxu0
      %v983 = vadd.f32 0.0, %v982
      %v984 = vpop.f32.mrb[0].mxu0
      %v985 = vadd.f32 0.0, %v984
      %986 = vmatprep.mubr.bf16.mxu0 %v824
      %987 = vmatmul.mubr.bf16.gmra.mrb[0].mxu0 %v823
      %v988 = vpop.f32.mrb[0].mxu0
      %v989 = vadd.f32 0.0, %v988
      %v990 = vpop.f32.mrb[0].mxu0
      %v991 = vadd.f32 0.0, %v990
      %v992 = vpop.f32.mrb[0].mxu0
      %v993 = vadd.f32 0.0, %v992
      %v994 = vpop.f32.mrb[0].mxu0
      %v995 = vadd.f32 0.0, %v994
      %996 = vmatprep.mubr.bf16.mxu0 %v827
      %997 = vmatmul.mubr.bf16.gmra.mrb[0].mxu0 %v826
      %v998 = vpop.f32.mrb[0].mxu0
      %v999 = vadd.f32 0.0, %v998
      %v1000 = vpop.f32.mrb[0].mxu0
      %v1001 = vadd.f32 0.0, %v1000
      %v1002 = vpop.f32.mrb[0].mxu0
      %v1003 = vadd.f32 0.0, %v1002
      %v1004 = vpop.f32.mrb[0].mxu0
      %v1005 = vadd.f32 0.0, %v1004
      %1006 = vmatprep.mubr.bf16.mxu0 %v830
      %1007 = vmatmul.mubr.bf16.gmra.mrb[0].mxu0 %v829
      %v1008 = vpop.f32.mrb[0].mxu0
      %v1009 = vadd.f32 0.0, %v1008
      %v1010 = vpop.f32.mrb[0].mxu0
      %v1011 = vadd.f32 0.0, %v1010
      %v1012 = vpop.f32.mrb[0].mxu0
      %v1013 = vadd.f32 0.0, %v1012
      %v1014 = vpop.f32.mrb[0].mxu0
      %v1015 = vadd.f32 0.0, %v1014
      %1016 = vmatprep.mubr.bf16.mxu0 %v833
      %1017 = vmatmul.mubr.bf16.gmra.mrb[0].mxu0 %v832
      %v1018 = vpop.f32.mrb[0].mxu0
      %v1019 = vadd.f32 0.0, %v1018
      %v1020 = vpop.f32.mrb[0].mxu0
      %v1021 = vadd.f32 0.0, %v1020
      %v1022 = vpop.f32.mrb[0].mxu0
      %v1023 = vadd.f32 0.0, %v1022
      %v1024 = vpop.f32.mrb[0].mxu0
      %v1025 = vadd.f32 0.0, %v1024
      %1026 = vmatprep.mubr.bf16.mxu0 %v836
      %1027 = vmatmul.mubr.bf16.gmra.mrb[0].mxu0 %v835
      %v1028 = vpop.f32.mrb[0].mxu0
      %v1029 = vadd.f32 0.0, %v1028
      %v1030 = vpop.f32.mrb[0].mxu0
      %v1031 = vadd.f32 0.0, %v1030
      %v1032 = vpop.f32.mrb[0].mxu0
      %v1033 = vadd.f32 0.0, %v1032
      %v1034 = vpop.f32.mrb[0].mxu0
      %v1035 = vadd.f32 0.0, %v1034
      %1036 = vmatprep.mubr.bf16.mxu0 %v839
      %1037 = vmatmul.mubr.bf16.gmra.mrb[0].mxu0 %v838
      %v1038 = vpop.f32.mrb[0].mxu0
      %v1039 = vadd.f32 0.0, %v1038
      %v1040 = vpop.f32.mrb[0].mxu0
      %v1041 = vadd.f32 0.0, %v1040
      %v1042 = vpop.f32.mrb[0].mxu0
      %v1043 = vadd.f32 0.0, %v1042
      %v1044 = vpop.f32.mrb[0].mxu0
      %v1045 = vadd.f32 0.0, %v1044
      %1046 = vdwg.mxu0
      %1047 = vmatprep.subr.bf16.mxu0 %v643
      %1048 = vmatpush1.bf16.msra.mxu0 %v642
      %1049 = vmatprep.subr.bf16.mxu0 %v645
      %1050 = vmatpush1.bf16.msra.mxu0 %v644
      %1051 = vmatprep.subr.bf16.mxu0 %v647
      %1052 = vmatpush1.bf16.msra.mxu0 %v646
      %1053 = vmatprep.subr.bf16.mxu0 %v649
      %1054 = vmatpush1.bf16.msra.mxu0 %v648
      %1055 = vmatprep.subr.bf16.mxu0 %v651
      %1056 = vmatpush1.bf16.msra.mxu0 %v650
      %1057 = vmatprep.subr.bf16.mxu0 %v902
      %1058 = vmatpush1.bf16.msra.mxu0 %v899
      %1059 = vmatprep.subr.bf16.mxu0 0
      %1060 = vmatpush1.bf16.msra.mxu0 0
      %1061 = vmatprep.subr.bf16.mxu0 0
      %1062 = vmatpush1.bf16.msra.mxu0 0
      %1063 = vmatprep.subr.bf16.mxu0 0
      %1064 = vmatpush1.bf16.msra.mxu0 0
      %1065 = vmatprep.subr.bf16.mxu0 0
      %1066 = vmatpush1.bf16.msra.mxu0 0
      %1067 = vmatprep.subr.bf16.mxu0 0
      %1068 = vmatpush1.bf16.msra.mxu0 0
      %1069 = vmatprep.subr.bf16.mxu0 0
      %1070 = vmatpush1.bf16.msra.mxu0 0
      %1071 = vmatprep.subr.bf16.mxu0 0
      %1072 = vmatpush1.bf16.msra.mxu0 0
      %1073 = vmatprep.subr.bf16.mxu0 0
      %1074 = vmatpush1.bf16.msra.mxu0 0
      %1075 = vmatprep.subr.bf16.mxu0 0
      %1076 = vmatpush1.bf16.msra.mxu0 0
      %1077 = vmatprep.subr.bf16.mxu0 0
      %1078 = vmatpush1.bf16.msra.mxu0 0
      %1079 = vmatprep.mubr.bf16.mxu0 0
      %1080 = vmatmul.mubr.bf16.gmra.mrb[0].mxu0 %v865
      %v1081 = vpop.f32.mrb[0].mxu0
      %v1082 = vadd.f32 %v939, %v1081
      %v1083 = vpop.f32.mrb[0].mxu0
      %v1084 = vadd.f32 %v941, %v1083
      %v1085 = vpop.f32.mrb[0].mxu0
      %v1086 = vadd.f32 %v943, %v1085
      %v1087 = vpop.f32.mrb[0].mxu0
      %v1088 = vadd.f32 %v945, %v1087
      %1089 = vmatprep.mubr.bf16.mxu0 0
      %1090 = vmatmul.mubr.bf16.gmra.mrb[0].mxu0 %v868
      %v1091 = vpop.f32.mrb[0].mxu0
      %v1092 = vadd.f32 %v949, %v1091
      %v1093 = vpop.f32.mrb[0].mxu0
      %v1094 = vadd.f32 %v951, %v1093
      %v1095 = vpop.f32.mrb[0].mxu0
      %v1096 = vadd.f32 %v953, %v1095
      %v1097 = vpop.f32.mrb[0].mxu0
      %v1098 = vadd.f32 %v955, %v1097
      %1099 = vmatprep.mubr.bf16.mxu0 0
      %1100 = vmatmul.mubr.bf16.gmra.mrb[0].mxu0 %v871
      %v1101 = vpop.f32.mrb[0].mxu0
      %v1102 = vadd.f32 %v959, %v1101
      %v1103 = vpop.f32.mrb[0].mxu0
      %v1104 = vadd.f32 %v961, %v1103
      %v1105 = vpop.f32.mrb[0].mxu0
      %v1106 = vadd.f32 %v963, %v1105
      %v1107 = vpop.f32.mrb[0].mxu0
      %v1108 = vadd.f32 %v965, %v1107
      %1109 = vmatprep.mubr.bf16.mxu0 0
      %1110 = vmatmul.mubr.bf16.gmra.mrb[0].mxu0 %v874
      %v1111 = vpop.f32.mrb[0].mxu0
      %v1112 = vadd.f32 %v969, %v1111
      %v1113 = vpop.f32.mrb[0].mxu0
      %v1114 = vadd.f32 %v971, %v1113
      %v1115 = vpop.f32.mrb[0].mxu0
      %v1116 = vadd.f32 %v973, %v1115
      %v1117 = vpop.f32.mrb[0].mxu0
      %v1118 = vadd.f32 %v975, %v1117
      %1119 = vmatprep.mubr.bf16.mxu0 0
      %1120 = vmatmul.mubr.bf16.gmra.mrb[0].mxu0 %v877
      %v1121 = vpop.f32.mrb[0].mxu0
      %v1122 = vadd.f32 %v979, %v1121
      %v1123 = vpop.f32.mrb[0].mxu0
      %v1124 = vadd.f32 %v981, %v1123
      %v1125 = vpop.f32.mrb[0].mxu0
      %v1126 = vadd.f32 %v983, %v1125
      %v1127 = vpop.f32.mrb[0].mxu0
      %v1128 = vadd.f32 %v985, %v1127
      %1129 = vmatprep.mubr.bf16.mxu0 0
      %1130 = vmatmul.mubr.bf16.gmra.mrb[0].mxu0 %v880
      %v1131 = vpop.f32.mrb[0].mxu0
      %v1132 = vadd.f32 %v989, %v1131
      %v1133 = vpop.f32.mrb[0].mxu0
      %v1134 = vadd.f32 %v991, %v1133
      %v1135 = vpop.f32.mrb[0].mxu0
      %v1136 = vadd.f32 %v993, %v1135
      %v1137 = vpop.f32.mrb[0].mxu0
      %v1138 = vadd.f32 %v995, %v1137
      %1139 = vmatprep.mubr.bf16.mxu0 0
      %1140 = vmatmul.mubr.bf16.gmra.mrb[0].mxu0 %v883
      %v1141 = vpop.f32.mrb[0].mxu0
      %v1142 = vadd.f32 %v999, %v1141
      %v1143 = vpop.f32.mrb[0].mxu0
      %v1144 = vadd.f32 %v1001, %v1143
      %v1145 = vpop.f32.mrb[0].mxu0
      %v1146 = vadd.f32 %v1003, %v1145
      %v1147 = vpop.f32.mrb[0].mxu0
      %v1148 = vadd.f32 %v1005, %v1147
      %1149 = vmatprep.mubr.bf16.mxu0 0
      %1150 = vmatmul.mubr.bf16.gmra.mrb[0].mxu0 %v886
      %v1151 = vpop.f32.mrb[0].mxu0
      %v1152 = vadd.f32 %v1009, %v1151
      %v1153 = vpop.f32.mrb[0].mxu0
      %v1154 = vadd.f32 %v1011, %v1153
      %v1155 = vpop.f32.mrb[0].mxu0
      %v1156 = vadd.f32 %v1013, %v1155
      %v1157 = vpop.f32.mrb[0].mxu0
      %v1158 = vadd.f32 %v1015, %v1157
      %1159 = vmatprep.mubr.bf16.mxu0 0
      %1160 = vmatmul.mubr.bf16.gmra.mrb[0].mxu0 %v889
      %v1161 = vpop.f32.mrb[0].mxu0
      %v1162 = vadd.f32 %v1019, %v1161
      %v1163 = vpop.f32.mrb[0].mxu0
      %v1164 = vadd.f32 %v1021, %v1163
      %v1165 = vpop.f32.mrb[0].mxu0
      %v1166 = vadd.f32 %v1023, %v1165
      %v1167 = vpop.f32.mrb[0].mxu0
      %v1168 = vadd.f32 %v1025, %v1167
      %1169 = vmatprep.mubr.bf16.mxu0 0
      %1170 = vmatmul.mubr.bf16.gmra.mrb[0].mxu0 %v892
      %v1171 = vpop.f32.mrb[0].mxu0
      %v1172 = vadd.f32 %v1029, %v1171
      %v1173 = vpop.f32.mrb[0].mxu0
      %v1174 = vadd.f32 %v1031, %v1173
      %v1175 = vpop.f32.mrb[0].mxu0
      %v1176 = vadd.f32 %v1033, %v1175
      %v1177 = vpop.f32.mrb[0].mxu0
      %v1178 = vadd.f32 %v1035, %v1177
      %1179 = vmatprep.mubr.bf16.mxu0 0
      %1180 = vmatmul.mubr.bf16.gmra.mrb[0].mxu0 %v895
      %v1181 = vpop.f32.mrb[0].mxu0
      %v1182 = vadd.f32 %v1039, %v1181
      %v1183 = vpop.f32.mrb[0].mxu0
      %v1184 = vadd.f32 %v1041, %v1183
      %v1185 = vpop.f32.mrb[0].mxu0
      %v1186 = vadd.f32 %v1043, %v1185
      %v1187 = vpop.f32.mrb[0].mxu0
      %v1188 = vadd.f32 %v1045, %v1187
      %1189 = vdwg.mxu0
      %1190 = vst [vmem:[%s177] sm:$0xff] %v1082
      %vm1191 = vcmask 556032
      %1192 = vst.msk [vmem:[%s177 + $0x8] sm:$0xff] %vm1191, %v1084
      %1193 = vst [vmem:[%s177 + $0x10] sm:$0xff] %v1086
      %1194 = vst.msk [vmem:[%s177 + $0x18] sm:$0xff] %vm1191, %v1088
      %1195 = vst [vmem:[%s177 + $0x20] sm:$0xff] %v1092
      %1196 = vst.msk [vmem:[%s177 + $0x28] sm:$0xff] %vm1191, %v1094
      %1197 = vst [vmem:[%s177 + $0x30] sm:$0xff] %v1096
      %1198 = vst.msk [vmem:[%s177 + $0x38] sm:$0xff] %vm1191, %v1098
      %1199 = vst [vmem:[%s177 + $0x40] sm:$0xff] %v1102
      %1200 = vst.msk [vmem:[%s177 + $0x48] sm:$0xff] %vm1191, %v1104
      %1201 = vst [vmem:[%s177 + $0x50] sm:$0xff] %v1106
      %1202 = vst.msk [vmem:[%s177 + $0x58] sm:$0xff] %vm1191, %v1108
      %1203 = vst [vmem:[%s177 + $0x60] sm:$0xff] %v1112
      %1204 = vst.msk [vmem:[%s177 + $0x68] sm:$0xff] %vm1191, %v1114
      %1205 = vst [vmem:[%s177 + $0x70] sm:$0xff] %v1116
      %1206 = vst.msk [vmem:[%s177 + $0x78] sm:$0xff] %vm1191, %v1118
      %1207 = vst [vmem:[%s177 + $0x80] sm:$0xff] %v1122
      %1208 = vst.msk [vmem:[%s177 + $0x88] sm:$0xff] %vm1191, %v1124
      %1209 = vst [vmem:[%s177 + $0x90] sm:$0xff] %v1126
      %1210 = vst.msk [vmem:[%s177 + $0x98] sm:$0xff] %vm1191, %v1128
      %1211 = vst [vmem:[%s177 + $0xa0] sm:$0xff] %v1132
      %1212 = vst.msk [vmem:[%s177 + $0xa8] sm:$0xff] %vm1191, %v1134
      %1213 = vst [vmem:[%s177 + $0xb0] sm:$0xff] %v1136
      %1214 = vst.msk [vmem:[%s177 + $0xb8] sm:$0xff] %vm1191, %v1138
      %1215 = vst [vmem:[%s177 + $0xc0] sm:$0xff] %v1142
      %1216 = vst.msk [vmem:[%s177 + $0xc8] sm:$0xff] %vm1191, %v1144
      %1217 = vst [vmem:[%s177 + $0xd0] sm:$0xff] %v1146
      %1218 = vst.msk [vmem:[%s177 + $0xd8] sm:$0xff] %vm1191, %v1148
      %1219 = vst [vmem:[%s177 + $0xe0] sm:$0xff] %v1152
      %1220 = vst.msk [vmem:[%s177 + $0xe8] sm:$0xff] %vm1191, %v1154
      %1221 = vst [vmem:[%s177 + $0xf0] sm:$0xff] %v1156
      %1222 = vst.msk [vmem:[%s177 + $0xf8] sm:$0xff] %vm1191, %v1158
      %1223 = vst [vmem:[%s177 + $0x100] sm:$0xff] %v1162
      %1224 = vst.msk [vmem:[%s177 + $0x108] sm:$0xff] %vm1191, %v1164
      %1225 = vst [vmem:[%s177 + $0x110] sm:$0xff] %v1166
      %1226 = vst.msk [vmem:[%s177 + $0x118] sm:$0xff] %vm1191, %v1168
      %1227 = vst [vmem:[%s177 + $0x120] sm:$0xff] %v1172
      %1228 = vst.msk [vmem:[%s177 + $0x128] sm:$0xff] %vm1191, %v1174
      %1229 = vst [vmem:[%s177 + $0x130] sm:$0xff] %v1176
      %1230 = vst.msk [vmem:[%s177 + $0x138] sm:$0xff] %vm1191, %v1178
      %1231 = vst [vmem:[%s177 + $0x140] sm:$0xff] %v1182
      %1232 = vst.msk [vmem:[%s177 + $0x148] sm:$0xff] %vm1191, %v1184
      %1233 = vst [vmem:[%s177 + $0x150] sm:$0xff] %v1186
      %1234 = vst.msk [vmem:[%s177 + $0x158] sm:$0xff] %vm1191, %v1188
      %s1235 = smul.u32 22, %s14
      %p1236 = scmp.lt.s32.totalorder %s1235, 43
      %s1237 = scalar_select %p1236, %s1235, 43
      %s1238 = smul.addr %s1237, 2
      %s1239 = smul.addr %s1238, 8
      %s1240 = scalar_lea.vmem %s3, %s1239
      // Predicated region
      $region33: #{se_conv_forward.1} parent=31 // pred_check
        %p1241 = pneg %p100
      $region34: #{se_conv_forward.1} parent=31 // pred_check_branch
        %1243 = sbr.rel (%p1241) target = $region36
      $region35: #{se_conv_forward.1} parent=31 // pred_region
        %s1244 = smul.u32 22, %s14
      $region36: #{se_conv_forward.1} parent=31 // pred_fallthru
        _
    $region32: #{se_conv_forward.1} parent=5 // pred_fallthru
      _
    %p1245 = scmp.le.s32.totalorder 2, %s9
    // Predicated region
    $region37: #{se_conv_forward.1} parent=5 // pred_check
      %p1246 = pneg %p1245
    $region38: #{se_conv_forward.1} parent=5 // pred_check_branch
      %1248 = sbr.rel (%p1246) target = $region40
    $region39: #{se_conv_forward.1} parent=5 // pred_region
      %s1249 = ssub.s32 %s9, 2
      // Predicated region
      $region41: #{se_conv_forward.1} parent=39 // pred_check
        %p1250 = pneg %p106
      $region42: #{se_conv_forward.1} parent=39 // pred_check_branch
        %1252 = sbr.rel (%p1250) target = $region44
      $region43: #{se_conv_forward.1} parent=39 // pred_region
        %s1253 = smul.u32 22, %s15
        %p1254 = scmp.lt.s32.totalorder %s1253, 43
        %s1255 = scalar_select %p1254, %s1253, 43
        %s1256 = smul.addr %s1255, 2
        %s1257 = smul.addr %s1256, 8
        %s1258 = scalar_lea.vmem %s3, %s1257
      $region44: #{se_conv_forward.1} parent=39 // pred_fallthru
        _
    $region40: #{se_conv_forward.1} parent=5 // pred_fallthru
      _
  $region6: #{se_conv_forward.1} parent=0 // loop_footer
    %s13 = sadd.s32 1, %s9
  $region7: #{se_conv_forward.1} parent=0 // loop_footer_branch
    %8 = sbr.rel target = $region3
  $region8: #{se_conv_forward.1} parent=0 // loop_exit
    _

</llo_original>
